<compile_context>
chip_gen: v7x
topology: tpu7x:2x2x1
jax: 0.10.0
libtpu: 0.0.40
codegen_flags: <defaults>
</compile_context>

<pallas_src>
import functools

import jax
import jax.numpy as jnp
from jax.experimental import pallas as pl
from jax.experimental.pallas import tpu as pltpu


def _round_up(x, m):
    return ((x + m - 1) // m) * m


def _bu_initial_block_kernel(xw_ref, w1_ref, lat_ref, ws_ref, b_ref, out_ref,
                             *, cin, width, tn):
    # Block shapes (per grid step):
    #   xw_ref : (1, 1, Cin, TXp) bf16  row-flattened, vertically padded x window
    #                                   (1-element front pad) = this tile + halo
    #   w1_ref : (F, 9*Cin) f32         3x3 conv weights with norm1 scale folded
    #   lat_ref: (1, F, TN) bf16        lateral activations for this tile
    #   ws_ref : (F, F) bf16            1x1 side conv weights with norm2 scale folded
    #   b_ref  : (F, 2) f32             [:, 0] = norm1 bias, [:, 1] = norm2 bias
    #   out_ref: (1, F, TN) out_dtype   TN multiple of 128 -> lane-dense stores
    del cin
    xw = xw_ref[0, 0].astype(jnp.float32)                    # (Cin, TXp)

    # Column-within-row of each output pixel in this tile.  Needed because the
    # row-flattened horizontal taps wrap across rows at the image borders.
    q0 = pl.program_id(1) * tn
    col = (q0 + jax.lax.broadcasted_iota(jnp.int32, (1, tn), 1)) % width
    not_left = col != 0
    not_right = col != (width - 1)

    # In-VMEM im2col: 9 statically shifted views of the resident x window.
    views = []
    for ky in range(3):
        for kx in range(3):
            off = ky * width + kx                            # flat tap offset
            v = xw[:, off:off + tn]                          # (Cin, TN) static slice
            if kx == 0:     # "left neighbour" of column 0 is horizontal padding
                v = jnp.where(not_left, v, jnp.zeros_like(v))
            elif kx == 2:   # "right neighbour" of column W-1 is horizontal padding
                v = jnp.where(not_right, v, jnp.zeros_like(v))
            views.append(v)
    patches = jnp.concatenate(views, axis=0)                 # (9*Cin, TN) f32

    x = jnp.dot(w1_ref[...], patches, preferred_element_type=jnp.float32)
    x = jnp.maximum(x + b_ref[:, 0:1], 0.0)                  # norm1 bias + activation

    side = jnp.dot(ws_ref[...], lat_ref[0], preferred_element_type=jnp.float32)
    side = jnp.maximum(side + b_ref[:, 1:2], 0.0)            # norm2 bias + relu1

    # relu2 dropped: x >= 0 and side >= 0, so relu(x + side) == x + side.
    out_ref[0] = (x + side).astype(out_ref.dtype)


def _pick_tiles(hw, batch, cin, f, width, lat_bytes, out_bytes,
                vmem_budget=10 << 20):
    """Choose (HWp, TN): lane-dense padded spatial size and spatial tile size."""
    # Pad HW to a lane multiple; use a multiple of 256 for B == 1 so the
    # spatial axis can always be split in two (keeps both v7x TCs busy).
    hwp = _round_up(hw, 256 if batch == 1 else 128)
    halo128 = _round_up(2 * width + 2, 128)

    def step_bytes(tn):
        # Double-buffered per-step blocks (weights / biases are tiny, ignored).
        return 2 * (tn * f * lat_bytes + tn * f * out_bytes
                    + (tn + halo128) * cin * 2)

    tn = 128
    t = 128
    while t <= hwp:
        if hwp % t == 0 and step_bytes(t) <= vmem_budget:
            tn = t
        t += 128
    if batch == 1 and hwp // tn < 2 and hwp >= 256:
        tn = hwp // 2            # hwp % 256 == 0 -> tn is a multiple of 128
    return hwp, tn


def bu_initial_block(x_nchw, lateral_nchw, w1_oihw, ws_oihw,
                     scale1, bias1, scale2, bias2, flags=None,
                     compute_dtype=jnp.bfloat16, out_dtype=jnp.bfloat16):
    """x_nchw: (B, Cin, H, W); lateral_nchw: (B, F, H, W). Returns (B, F, H, W)."""
    del flags  # TODO(synk): used by the task-conditioned norm in the real model.
    B, Cin, H, W = x_nchw.shape
    F = w1_oihw.shape[0]
    HW = H * W
    KC = 9 * Cin

    lat_bytes = jnp.dtype(compute_dtype).itemsize
    out_bytes = jnp.dtype(out_dtype).itemsize
    HWp, TN = _pick_tiles(HW, B, Cin, F, W, lat_bytes, out_bytes)
    ntiles = HWp // TN
    halo = 2 * W + 2                      # max flat tap offset (+1 front pad)
    TXp = _round_up(TN + halo, 128)

    # ---- x: vertical pad + row-flatten + 1-element front pad (bf16; ~1x the
    # input bytes — no 9x im2col materialization in HBM) ------------------------
    xv = jnp.pad(x_nchw.astype(compute_dtype), ((0, 0), (0, 0), (1, 1), (0, 0)))
    xflat = xv.reshape(B, Cin, (H + 2) * W)
    Lx = (ntiles - 1) * TN + TXp                    # last tile window must fit
    xflat = jnp.pad(xflat, ((0, 0), (0, 0), (1, Lx - (H + 2) * W - 1)))
    # Overlapping per-tile windows (only the tiny 3x3 halo is duplicated).
    x_tiles = jnp.stack([xflat[:, :, n * TN:n * TN + TXp] for n in range(ntiles)],
                        axis=1)                     # (B, ntiles, Cin, TXp)

    # ---- lateral: flatten + lane-pad to HWp -----------------------------------
    lat = lateral_nchw.astype(compute_dtype).reshape(B, F, HW)
    if HWp != HW:
        lat = jnp.pad(lat, ((0, 0), (0, 0), (0, HWp - HW)))

    # ---- fold eval-mode norm scales into the conv weights; keep only biases ---
    w1f = w1_oihw.astype(jnp.float32) * scale1.astype(jnp.float32)[:, None, None, None]
    w1f = jnp.transpose(w1f, (0, 2, 3, 1)).reshape(F, KC)           # f32 (F, 9*Cin)
    wsf = (ws_oihw[:, :, 0, 0].astype(jnp.float32)
           * scale2.astype(jnp.float32)[:, None]).astype(compute_dtype)
    biases = jnp.stack([bias1.astype(jnp.float32),
                        bias2.astype(jnp.float32)], axis=1)         # (F, 2)

    kernel = functools.partial(_bu_initial_block_kernel, cin=Cin, width=W, tn=TN)

    out = pl.pallas_call(
        kernel,
        out_shape=jax.ShapeDtypeStruct((B, F, HWp), out_dtype),
        grid_spec=pltpu.PrefetchScalarGridSpec(
            num_scalar_prefetch=0,
            grid=(B, ntiles),
            in_specs=[
                pl.BlockSpec((1, 1, Cin, TXp), lambda b, n: (b, n, 0, 0)),  # x window
                pl.BlockSpec((F, KC), lambda b, n: (0, 0)),                 # w1 folded
                pl.BlockSpec((1, F, TN), lambda b, n: (b, 0, n)),           # lateral
                pl.BlockSpec((F, F), lambda b, n: (0, 0)),                  # ws folded
                pl.BlockSpec((F, 2), lambda b, n: (0, 0)),                  # biases
            ],
            out_specs=pl.BlockSpec((1, F, TN), lambda b, n: (b, 0, n)),
        ),
        compiler_params=pltpu.CompilerParams(
            dimension_semantics=("parallel", "parallel")),
    )(x_tiles, w1f, lat, wsf, biases)

    if HWp != HW:
        out = out[:, :, :HW]
    # Free reshape (same memory order as NCHW) — no transpose needed.
    return out.reshape(B, F, H, W)


def _reference(x_nchw, lateral_nchw, w1_oihw, ws_oihw, s1, b1, s2, b2):
    """Pure-JAX f32 reference mirroring the PyTorch forward (NCHW)."""
    conv = jax.lax.conv_general_dilated(
        x_nchw, w1_oihw, window_strides=(1, 1), padding="SAME",
        dimension_numbers=("NCHW", "OIHW", "NCHW"))
    x = conv * s1[None, :, None, None] + b1[None, :, None, None]
    x = jnp.maximum(x, 0.0)
    side = jax.lax.conv_general_dilated(
        lateral_nchw, ws_oihw, window_strides=(1, 1), padding="SAME",
        dimension_numbers=("NCHW", "OIHW", "NCHW"))
    side = side * s2[None, :, None, None] + b2[None, :, None, None]
    side = jnp.maximum(side, 0.0)
    return jnp.maximum(x + side, 0.0)


if __name__ == "__main__":
    B, Cin, H, W = 2, 4, 16, 16      # small NCHW image batch
    F = 32                           # opts.nfilters[0]

    key = jax.random.PRNGKey(0)
    kx, klat, kw1, kws, kg1, kb1, kg2, kb2, kflag = jax.random.split(key, 9)

    x = jax.random.normal(kx, (B, Cin, H, W), jnp.float32)
    lateral = jax.random.normal(klat, (B, F, H, W), jnp.float32)
    flags = jax.random.normal(kflag, (B, 8), jnp.float32)   # unused in forward

    # Deterministic parameter init (shapes per the module's __init__).
    w1 = jax.random.normal(kw1, (F, Cin, 3, 3), jnp.float32) * 0.1   # shared.conv1
    ws = jax.random.normal(kws, (F, F, 1, 1), jnp.float32) * 0.1     # shared.bot_lat
    scale1 = 1.0 + 0.1 * jax.random.normal(kg1, (F,), jnp.float32)
    bias1 = 0.1 * jax.random.normal(kb1, (F,), jnp.float32)
    scale2 = 1.0 + 0.1 * jax.random.normal(kg2, (F,), jnp.float32)
    bias2 = 0.1 * jax.random.normal(kb2, (F,), jnp.float32)

    out = bu_initial_block(x, lateral, w1, ws, scale1, bias1, scale2, bias2,
                           flags=flags)
    out = jax.block_until_ready(out)

    ref = _reference(x, lateral, w1, ws, scale1, bias1, scale2, bias2)
    assert out.shape == (B, F, H, W)
    # Tolerance accounts for bf16 inputs / bf16 output (f32 accumulation) vs f32 ref.
    assert jnp.allclose(out.astype(jnp.float32), ref, rtol=5e-2, atol=5e-2), \
        "mismatch vs reference"

    print("KERNEL_OK")
</pallas_src>

<mosaic_0001>
module attributes {stable_mosaic.version = 11 : i64} {
  func.func @_bu_initial_block_kernel(%arg0: i32, %arg1: i32, %arg2: memref<1x1x4x384xbf16, #tpu.memory_space<vmem>>, %arg3: memref<32x36xf32, #tpu.memory_space<vmem>>, %arg4: memref<1x32x256xbf16, #tpu.memory_space<vmem>>, %arg5: memref<32x32xbf16, #tpu.memory_space<vmem>>, %arg6: memref<32x2xf32, #tpu.memory_space<vmem>>, %arg7: memref<1x32x256xbf16, #tpu.memory_space<vmem>>) attributes {dimension_semantics = [#tpu.dimension_semantics<parallel>, #tpu.dimension_semantics<parallel>], iteration_bounds = array<i64: 2, 1>, scalar_prefetch = 0 : i64, scratch_operands = 0 : i64, tpu.core_type = #tpu.core_type<tc>, window_params = [{transform_indices = @transform_0, window_bounds = array<i64: 1, 1, 4, 384>}, {pipeline_mode = #tpu.pipeline_mode<synchronous>, transform_indices = @transform_1, window_bounds = array<i64: 32, 36>}, {transform_indices = @transform_2, window_bounds = array<i64: 1, 32, 256>}, {pipeline_mode = #tpu.pipeline_mode<synchronous>, transform_indices = @transform_3, window_bounds = array<i64: 32, 32>}, {pipeline_mode = #tpu.pipeline_mode<synchronous>, transform_indices = @transform_4, window_bounds = array<i64: 32, 2>}, {transform_indices = @transform_5, window_bounds = array<i64: 1, 32, 256>}]} {
    %c0 = arith.constant 0 : index
    %c0_0 = arith.constant 0 : index
    %c0_1 = arith.constant 0 : index
    %c0_2 = arith.constant 0 : index
    %0 = vector.load %arg2[%c0, %c0_0, %c0_1, %c0_2] : memref<1x1x4x384xbf16, #tpu.memory_space<vmem>>, vector<1x1x4x384xbf16>
    %1 = vector.shape_cast %0 : vector<1x1x4x384xbf16> to vector<4x384xbf16>
    %2 = arith.extf %1 : vector<4x384xbf16> to vector<4x384xf32>
    %c256_i32 = arith.constant 256 : i32
    %3 = arith.muli %arg1, %c256_i32 : i32
    %4 = tpu.iota {dimensions = array<i32: 1>} : vector<1x256xi32>
    %5 = vector.broadcast %3 : i32 to vector<1x256xi32>
    %6 = arith.addi %5, %4 : vector<1x256xi32>
    %c16_i32 = arith.constant 16 : i32
    %c0_i32 = arith.constant 0 : i32
    %7 = arith.cmpi eq, %c16_i32, %c0_i32 : i32
    %c1_i32 = arith.constant 1 : i32
    %8 = arith.select %7, %c1_i32, %c16_i32 : i32
    %9 = vector.broadcast %8 : i32 to vector<1x256xi32>
    %10 = arith.remsi %6, %9 : vector<1x256xi32>
    %c0_i32_3 = arith.constant 0 : i32
    %11 = vector.broadcast %c0_i32_3 : i32 to vector<1x256xi32>
    %12 = arith.cmpi ne, %10, %11 : vector<1x256xi32>
    %c0_i32_4 = arith.constant 0 : i32
    %13 = vector.broadcast %c0_i32_4 : i32 to vector<1x256xi32>
    %14 = arith.cmpi slt, %10, %13 : vector<1x256xi32>
    %c0_i32_5 = arith.constant 0 : i32
    %15 = arith.cmpi slt, %8, %c0_i32_5 : i32
    %16 = vector.broadcast %15 : i1 to vector<1x256xi1>
    %17 = vector.broadcast %16 : vector<1x256xi1> to vector<1x256xi1>
    %18 = arith.xori %14, %17 : vector<1x256xi1>
    %19 = arith.andi %18, %12 : vector<1x256xi1>
    %20 = vector.broadcast %8 : i32 to vector<1x256xi32>
    %21 = arith.addi %10, %20 : vector<1x256xi32>
    %22 = arith.select %19, %21, %10 : vector<1x256xi1>, vector<1x256xi32>
    %c0_i32_6 = arith.constant 0 : i32
    %23 = vector.broadcast %c0_i32_6 : i32 to vector<1x256xi32>
    %24 = arith.cmpi ne, %22, %23 : vector<1x256xi32>
    %c15_i32 = arith.constant 15 : i32
    %25 = vector.broadcast %c15_i32 : i32 to vector<1x256xi32>
    %26 = arith.cmpi ne, %22, %25 : vector<1x256xi32>
    %27 = vector.extract_strided_slice %2 {offsets = [0, 0], sizes = [4, 256], strides = [1, 1]} : vector<4x384xf32> to vector<4x256xf32>
    %cst = arith.constant 0.000000e+00 : f32
    %28 = vector.broadcast %cst : f32 to vector<4x256xf32>
    %29 = vector.shape_cast %24 : vector<1x256xi1> to vector<1x256xi1>
    %30 = vector.broadcast %29 : vector<1x256xi1> to vector<4x256xi1>
    %31 = arith.select %30, %27, %28 : vector<4x256xi1>, vector<4x256xf32>
    %32 = vector.extract_strided_slice %2 {offsets = [0, 1], sizes = [4, 256], strides = [1, 1]} : vector<4x384xf32> to vector<4x256xf32>
    %33 = vector.extract_strided_slice %2 {offsets = [0, 2], sizes = [4, 256], strides = [1, 1]} : vector<4x384xf32> to vector<4x256xf32>
    %cst_7 = arith.constant 0.000000e+00 : f32
    %34 = vector.broadcast %cst_7 : f32 to vector<4x256xf32>
    %35 = vector.shape_cast %26 : vector<1x256xi1> to vector<1x256xi1>
    %36 = vector.broadcast %35 : vector<1x256xi1> to vector<4x256xi1>
    %37 = arith.select %36, %33, %34 : vector<4x256xi1>, vector<4x256xf32>
    %38 = vector.extract_strided_slice %2 {offsets = [0, 16], sizes = [4, 256], strides = [1, 1]} : vector<4x384xf32> to vector<4x256xf32>
    %cst_8 = arith.constant 0.000000e+00 : f32
    %39 = vector.broadcast %cst_8 : f32 to vector<4x256xf32>
    %40 = vector.shape_cast %24 : vector<1x256xi1> to vector<1x256xi1>
    %41 = vector.broadcast %40 : vector<1x256xi1> to vector<4x256xi1>
    %42 = arith.select %41, %38, %39 : vector<4x256xi1>, vector<4x256xf32>
    %43 = vector.extract_strided_slice %2 {offsets = [0, 17], sizes = [4, 256], strides = [1, 1]} : vector<4x384xf32> to vector<4x256xf32>
    %44 = vector.extract_strided_slice %2 {offsets = [0, 18], sizes = [4, 256], strides = [1, 1]} : vector<4x384xf32> to vector<4x256xf32>
    %cst_9 = arith.constant 0.000000e+00 : f32
    %45 = vector.broadcast %cst_9 : f32 to vector<4x256xf32>
    %46 = vector.shape_cast %26 : vector<1x256xi1> to vector<1x256xi1>
    %47 = vector.broadcast %46 : vector<1x256xi1> to vector<4x256xi1>
    %48 = arith.select %47, %44, %45 : vector<4x256xi1>, vector<4x256xf32>
    %49 = vector.extract_strided_slice %2 {offsets = [0, 32], sizes = [4, 256], strides = [1, 1]} : vector<4x384xf32> to vector<4x256xf32>
    %cst_10 = arith.constant 0.000000e+00 : f32
    %50 = vector.broadcast %cst_10 : f32 to vector<4x256xf32>
    %51 = vector.shape_cast %24 : vector<1x256xi1> to vector<1x256xi1>
    %52 = vector.broadcast %51 : vector<1x256xi1> to vector<4x256xi1>
    %53 = arith.select %52, %49, %50 : vector<4x256xi1>, vector<4x256xf32>
    %54 = vector.extract_strided_slice %2 {offsets = [0, 33], sizes = [4, 256], strides = [1, 1]} : vector<4x384xf32> to vector<4x256xf32>
    %55 = vector.extract_strided_slice %2 {offsets = [0, 34], sizes = [4, 256], strides = [1, 1]} : vector<4x384xf32> to vector<4x256xf32>
    %cst_11 = arith.constant 0.000000e+00 : f32
    %56 = vector.broadcast %cst_11 : f32 to vector<4x256xf32>
    %57 = vector.shape_cast %26 : vector<1x256xi1> to vector<1x256xi1>
    %58 = vector.broadcast %57 : vector<1x256xi1> to vector<4x256xi1>
    %59 = arith.select %58, %55, %56 : vector<4x256xi1>, vector<4x256xf32>
    %60 = tpu.concatenate %31, %32, %37, %42, %43, %48, %53, %54, %59 in 0 : vector<4x256xf32>, vector<4x256xf32>, vector<4x256xf32>, vector<4x256xf32>, vector<4x256xf32>, vector<4x256xf32>, vector<4x256xf32>, vector<4x256xf32>, vector<4x256xf32> -> vector<36x256xf32>
    %c0_12 = arith.constant 0 : index
    %c0_13 = arith.constant 0 : index
    %61 = vector.load %arg3[%c0_12, %c0_13] : memref<32x36xf32, #tpu.memory_space<vmem>>, vector<32x36xf32>
    %cst_14 = arith.constant dense<0.000000e+00> : vector<32x256xf32>
    %62 = tpu.matmul %61, %60, %cst_14 {dimension_numbers = #tpu.dot_dimension_numbers<[1], [0], [0], [1], [0, 0, 1, 1], [], []>} : vector<32x36xf32>, vector<36x256xf32>, vector<32x256xf32> -> vector<32x256xf32>
    %c0_15 = arith.constant 0 : index
    %c0_16 = arith.constant 0 : index
    %63 = vector.load %arg6[%c0_15, %c0_16] : memref<32x2xf32, #tpu.memory_space<vmem>>, vector<32x1xf32>
    %64 = vector.broadcast %63 : vector<32x1xf32> to vector<32x256xf32>
    %65 = arith.addf %62, %64 : vector<32x256xf32>
    %cst_17 = arith.constant 0.000000e+00 : f32
    %66 = vector.broadcast %cst_17 : f32 to vector<32x256xf32>
    %67 = arith.maximumf %65, %66 : vector<32x256xf32>
    %c0_18 = arith.constant 0 : index
    %c0_19 = arith.constant 0 : index
    %68 = vector.load %arg5[%c0_18, %c0_19] : memref<32x32xbf16, #tpu.memory_space<vmem>>, vector<32x32xbf16>
    %c0_20 = arith.constant 0 : index
    %c0_21 = arith.constant 0 : index
    %c0_22 = arith.constant 0 : index
    %69 = vector.load %arg4[%c0_20, %c0_21, %c0_22] : memref<1x32x256xbf16, #tpu.memory_space<vmem>>, vector<1x32x256xbf16>
    %70 = vector.shape_cast %69 : vector<1x32x256xbf16> to vector<32x256xbf16>
    %cst_23 = arith.constant dense<0.000000e+00> : vector<32x256xf32>
    %71 = tpu.matmul %68, %70, %cst_23 {dimension_numbers = #tpu.dot_dimension_numbers<[1], [0], [0], [1], [0, 0, 1, 1], [], []>} : vector<32x32xbf16>, vector<32x256xbf16>, vector<32x256xf32> -> vector<32x256xf32>
    %c0_24 = arith.constant 0 : index
    %c1 = arith.constant 1 : index
    %72 = vector.load %arg6[%c0_24, %c1] : memref<32x2xf32, #tpu.memory_space<vmem>>, vector<32x1xf32>
    %73 = vector.broadcast %72 : vector<32x1xf32> to vector<32x256xf32>
    %74 = arith.addf %71, %73 : vector<32x256xf32>
    %cst_25 = arith.constant 0.000000e+00 : f32
    %75 = vector.broadcast %cst_25 : f32 to vector<32x256xf32>
    %76 = arith.maximumf %74, %75 : vector<32x256xf32>
    %77 = arith.addf %67, %76 : vector<32x256xf32>
    %78 = arith.truncf %77 : vector<32x256xf32> to vector<32x256xbf16>
    %c0_26 = arith.constant 0 : index
    %c0_27 = arith.constant 0 : index
    %c0_28 = arith.constant 0 : index
    %79 = vector.load %arg7[%c0_26, %c0_27, %c0_28] : memref<1x32x256xbf16, #tpu.memory_space<vmem>>, vector<1x32x256xbf16>
    %80 = vector.shape_cast %79 : vector<1x32x256xbf16> to vector<32x256xbf16>
    %81 = vector.shape_cast %78 : vector<32x256xbf16> to vector<1x32x256xbf16>
    tpu.vector_store %arg7[%c0_26, %c0_27, %c0_28], %81 {strides = array<i32>} : memref<1x32x256xbf16, #tpu.memory_space<vmem>>, vector<1x32x256xbf16>,
    return
  }
  func.func @transform_0(%arg0: i32, %arg1: i32) -> (i32, i32, i32, i32) {
    %c0_i32 = arith.constant 0 : i32
    %c0_i32_0 = arith.constant 0 : i32
    %c0_i32_1 = arith.constant 0 : i32
    return %arg0, %arg1, %c0_i32, %c0_i32_0 : i32, i32, i32, i32
  }
  func.func @transform_1(%arg0: i32, %arg1: i32) -> (i32, i32) {
    %c0_i32 = arith.constant 0 : i32
    %c0_i32_0 = arith.constant 0 : i32
    %c0_i32_1 = arith.constant 0 : i32
    return %c0_i32, %c0_i32_0 : i32, i32
  }
  func.func @transform_2(%arg0: i32, %arg1: i32) -> (i32, i32, i32) {
    %c0_i32 = arith.constant 0 : i32
    %c0_i32_0 = arith.constant 0 : i32
    return %arg0, %c0_i32, %arg1 : i32, i32, i32
  }
  func.func @transform_3(%arg0: i32, %arg1: i32) -> (i32, i32) {
    %c0_i32 = arith.constant 0 : i32
    %c0_i32_0 = arith.constant 0 : i32
    %c0_i32_1 = arith.constant 0 : i32
    return %c0_i32, %c0_i32_0 : i32, i32
  }
  func.func @transform_4(%arg0: i32, %arg1: i32) -> (i32, i32) {
    %c0_i32 = arith.constant 0 : i32
    %c0_i32_0 = arith.constant 0 : i32
    %c0_i32_1 = arith.constant 0 : i32
    return %c0_i32, %c0_i32_0 : i32, i32
  }
  func.func @transform_5(%arg0: i32, %arg1: i32) -> (i32, i32, i32) {
    %c0_i32 = arith.constant 0 : i32
    %c0_i32_0 = arith.constant 0 : i32
    return %arg0, %c0_i32, %arg1 : i32, i32, i32
  }
}

</mosaic_0001>

<llo_original>
// kernel: tpu_custom_call.1
$region0: #{tpu_custom_call.1}
  #allocation0 [shape = 'u32[]', space=smem, size = 0x4, offset = 0x4, fixed_abs, tag = 'smem constant byte address 0x4 - core index']
  #allocation1 [shape = 'u32[144,128]{1,0:T(1,128)}', space=vmem, size = 0x12000, scoped, tag = 'internal scratch']
  %s0 = inlined_call_operand.hbm [shape: bf16[2,1,4,384], index: 0, kind: input, shape index: {}]
  %s1 = inlined_call_operand.vmem [shape: f32[32,36], index: 1, kind: input, shape index: {}]
  %s2 = inlined_call_operand.hbm [shape: bf16[2,32,256], index: 2, kind: input, shape index: {}]
  %s3 = inlined_call_operand.hbm [shape: bf16[32,32], index: 3, kind: input, shape index: {}]
  %s4 = inlined_call_operand.vmem [shape: f32[32,2], index: 4, kind: input, shape index: {}]
  %s5 = inlined_call_operand.hbm [shape: bf16[2,32,256], index: 5, kind: output, shape index: {}]
  %s6 = sld [smem:[#allocation0]]
  $region65: #{tpu_custom_call.1} parent=0
    _
  %s8 = ssub.s32 1, %s6
  %s9 = scalar_select 0, %s8, %s6
  $region1: #{tpu_custom_call.1} parent=0
    #allocation2 [shape = 'u8[6144]{0}', space=vmem, size = 0x1800, scoped, tag = 'input window, operand 0']
    #allocation3 [shape = 's32[2]{0}', space=sflag, size = 0x8, scoped, tag = 'scoped memory for tpu_custom_call.1']
    #allocation4 [shape = 's32[2]{0}', space=sflag, size = 0x8, scoped, tag = 'scoped memory for tpu_custom_call.1']
    #allocation5 [shape = 'u8[32768]{0}', space=vmem, size = 0x8000, scoped, tag = 'input window, operand 2']
    #allocation6 [shape = 's32[2]{0}', space=sflag, size = 0x8, scoped, tag = 'scoped memory for tpu_custom_call.1']
    #allocation7 [shape = 'u8[8192]{0}', space=vmem, size = 0x2000, scoped, tag = 'input window, operand 3, single buffered']
    #allocation8 [shape = 'u8[32768]{0}', space=vmem, size = 0x8000, scoped, tag = 'output window, operand 0']
    %10 = vsyncpa [#allocation3], 0
    %s11 = scalar_lea.sflag [#allocation3], 1
    %12 = vsyncpa %s11, 0
    %13 = vsyncpa [#allocation6], 0
    %s14 = scalar_lea.sflag [#allocation6], 1
    %15 = vsyncpa %s14, 0
    %16 = vsyncpa [#allocation4], 0
    %s17 = scalar_lea.sflag [#allocation4], 1
    %18 = vsyncpa %s17, 0
    loop: start=0, step=1, limit=4
    $region2: #{tpu_custom_call.1} parent=1 // loop_pre_header
      _
    $region3: #{tpu_custom_call.1} parent=1 // loop_header
      %s20 = sphi 0, %s24
      %p21 = scmp.ge.s32.totalorder %s20, 4
      %s27 = sphi 0, %s39
      %s28 = sphi 0, %s35
      %s29 = sphi 0, %s27
      %s30 = sphi 0, %s28
      %s31 = sphi 0, %s29
      %s32 = sphi 0, %s30
      %s44 = sphi 0, %s46
      %s47 = sphi 0, %s44
      %s48 = sphi 0, %s47
      %s64 = sphi 0, %s48
      %s68 = sphi 0, %s68
      %s70 = sphi 0, %s68
      %s71 = sphi 0, %s70
      %s85 = sphi 0, %s71
      %s93 = sphi 0, %s95
      %s96 = sphi 0, %s93
      %s97 = sphi 0, %s96
      %s113 = sphi 0, %s97
      %s117 = sphi 0, %s117
      %s119 = sphi 0, %s117
      %s120 = sphi 0, %s119
      %s134 = sphi 0, %s120
      %s138 = sphi 0, %s138
      %s140 = sphi 0, %s138
      %s141 = sphi 0, %s140
      %s155 = sphi 0, %s141
      %s163 = sphi 0, %s165
      %s166 = sphi 0, %s163
      %s167 = sphi 0, %s166
      %s183 = sphi 0, %s167
    $region4: #{tpu_custom_call.1} parent=1 // loop_header_branch
      %23 = sbr.rel (%p21) target = $region8
    $region5: #{tpu_custom_call.1} parent=1 // loop_body
      %s25 = ssub.s32 %s20, 1
      %s26 = ssub.s32 %s20, 2
      %s33 = sadd.s32 1, %s28
      %p34 = scmp.ge.s32.totalorder %s33, 1
      %s35 = scalar_select %p34, 0, %s33
      %s36 = sadd.s32 1, %s27
      %s37 = scalar_select %p34, %s36, %s27
      %p38 = scmp.ge.s32.totalorder %s37, 2
      %s39 = scalar_select %p38, 0, %s37
      %s40 = ssub.s32 %s27, %s39
      %s41 = ssub.s32 %s28, %s35
      %s42 = sor.u32 %s40, %s41
      %p43 = scmp.eq.s32.totalorder %s42, 0
      %s45 = sadd.s32 %s44, 1
      %s46 = scalar_select %p43, %s44, %s45
      %p49 = pneg %p43
      %p50 = scmp.eq.s32.totalorder %s20, 1
      %p51 = por %p49, %p50
      %p52 = scmp.ne.s32.totalorder %s44, %s47
      %p53 = scmp.eq.s32.totalorder %s20, 0
      %p54 = por %p52, %p53
      %p55 = scmp.ne.s32.totalorder %s44, %s47
      %p56 = scmp.eq.s32.totalorder %s25, 1
      %p57 = por %p55, %p56
      %p58 = scmp.ne.s32.totalorder %s47, %s48
      %p59 = scmp.eq.s32.totalorder %s25, 0
      %p60 = por %p58, %p59
      %p61 = scmp.ne.s32.totalorder %s47, %s48
      %p62 = scmp.eq.s32.totalorder %s26, 1
      %p63 = por %p61, %p62
      %p65 = scmp.ne.s32.totalorder %s48, %s64
      %p66 = scmp.eq.s32.totalorder %s26, 0
      %p67 = por %p65, %p66
      %s69 = sadd.s32 %s68, 1
      %p72 = scmp.eq.s32.totalorder %s20, 1
      %p73 = scmp.ne.s32.totalorder %s68, %s70
      %p74 = scmp.eq.s32.totalorder %s20, 0
      %p75 = por %p73, %p74
      %p76 = scmp.ne.s32.totalorder %s68, %s70
      %p77 = scmp.eq.s32.totalorder %s25, 1
      %p78 = por %p76, %p77
      %p79 = scmp.ne.s32.totalorder %s70, %s71
      %p80 = scmp.eq.s32.totalorder %s25, 0
      %p81 = por %p79, %p80
      %p82 = scmp.ne.s32.totalorder %s70, %s71
      %p83 = scmp.eq.s32.totalorder %s26, 1
      %p84 = por %p82, %p83
      %p86 = scmp.ne.s32.totalorder %s71, %s85
      %p87 = scmp.eq.s32.totalorder %s26, 0
      %p88 = por %p86, %p87
      %s89 = ssub.s32 %s27, %s39
      %s90 = ssub.s32 %s28, %s35
      %s91 = sor.u32 %s89, %s90
      %p92 = scmp.eq.s32.totalorder %s91, 0
      %s94 = sadd.s32 %s93, 1
      %s95 = scalar_select %p92, %s93, %s94
      %p98 = pneg %p92
      %p99 = scmp.eq.s32.totalorder %s20, 1
      %p100 = por %p98, %p99
      %p101 = scmp.ne.s32.totalorder %s93, %s96
      %p102 = scmp.eq.s32.totalorder %s20, 0
      %p103 = por %p101, %p102
      %p104 = scmp.ne.s32.totalorder %s93, %s96
      %p105 = scmp.eq.s32.totalorder %s25, 1
      %p106 = por %p104, %p105
      %p107 = scmp.ne.s32.totalorder %s96, %s97
      %p108 = scmp.eq.s32.totalorder %s25, 0
      %p109 = por %p107, %p108
      %p110 = scmp.ne.s32.totalorder %s96, %s97
      %p111 = scmp.eq.s32.totalorder %s26, 1
      %p112 = por %p110, %p111
      %p114 = scmp.ne.s32.totalorder %s97, %s113
      %p115 = scmp.eq.s32.totalorder %s26, 0
      %p116 = por %p114, %p115
      %s118 = sadd.s32 %s117, 1
      %p121 = scmp.eq.s32.totalorder %s20, 1
      %p122 = scmp.ne.s32.totalorder %s117, %s119
      %p123 = scmp.eq.s32.totalorder %s20, 0
      %p124 = por %p122, %p123
      %p125 = scmp.ne.s32.totalorder %s117, %s119
      %p126 = scmp.eq.s32.totalorder %s25, 1
      %p127 = por %p125, %p126
      %p128 = scmp.ne.s32.totalorder %s119, %s120
      %p129 = scmp.eq.s32.totalorder %s25, 0
      %p130 = por %p128, %p129
      %p131 = scmp.ne.s32.totalorder %s119, %s120
      %p132 = scmp.eq.s32.totalorder %s26, 1
      %p133 = por %p131, %p132
      %p135 = scmp.ne.s32.totalorder %s120, %s134
      %p136 = scmp.eq.s32.totalorder %s26, 0
      %p137 = por %p135, %p136
      %s139 = sadd.s32 %s138, 1
      %p142 = scmp.eq.s32.totalorder %s20, 1
      %p143 = scmp.ne.s32.totalorder %s138, %s140
      %p144 = scmp.eq.s32.totalorder %s20, 0
      %p145 = por %p143, %p144
      %p146 = scmp.ne.s32.totalorder %s138, %s140
      %p147 = scmp.eq.s32.totalorder %s25, 1
      %p148 = por %p146, %p147
      %p149 = scmp.ne.s32.totalorder %s140, %s141
      %p150 = scmp.eq.s32.totalorder %s25, 0
      %p151 = por %p149, %p150
      %p152 = scmp.ne.s32.totalorder %s140, %s141
      %p153 = scmp.eq.s32.totalorder %s26, 1
      %p154 = por %p152, %p153
      %p156 = scmp.ne.s32.totalorder %s141, %s155
      %p157 = scmp.eq.s32.totalorder %s26, 0
      %p158 = por %p156, %p157
      %s159 = ssub.s32 %s27, %s39
      %s160 = ssub.s32 %s28, %s35
      %s161 = sor.u32 %s159, %s160
      %p162 = scmp.eq.s32.totalorder %s161, 0
      %s164 = sadd.s32 %s163, 1
      %s165 = scalar_select %p162, %s163, %s164
      %p168 = pneg %p162
      %p169 = scmp.eq.s32.totalorder %s20, 1
      %p170 = por %p168, %p169
      %p171 = scmp.ne.s32.totalorder %s163, %s166
      %p172 = scmp.eq.s32.totalorder %s20, 0
      %p173 = por %p171, %p172
      %p174 = scmp.ne.s32.totalorder %s163, %s166
      %p175 = scmp.eq.s32.totalorder %s25, 1
      %p176 = por %p174, %p175
      %p177 = scmp.ne.s32.totalorder %s166, %s167
      %p178 = scmp.eq.s32.totalorder %s25, 0
      %p179 = por %p177, %p178
      %p180 = scmp.ne.s32.totalorder %s166, %s167
      %p181 = scmp.eq.s32.totalorder %s26, 1
      %p182 = por %p180, %p181
      %p184 = scmp.ne.s32.totalorder %s167, %s183
      %p185 = scmp.eq.s32.totalorder %s26, 0
      %p186 = por %p184, %p185
      %p187 = scmp.le.s32.totalorder 1, %s20
      %p188 = scmp.lt.s32.totalorder %s20, 3
      %p189 = pnand %p187, %p188
      %p190 = pneg %p189
      // Predicated region
      $region9: #{tpu_custom_call.1} parent=5 // pred_check
        _
      $region10: #{tpu_custom_call.1} parent=5 // pred_check_branch
        %192 = sbr.rel (%p189) target = $region12
      $region11: #{tpu_custom_call.1} parent=5 // pred_region
        %s193 = ssub.s32 %s20, 1
        // Predicated region
        $region13: #{tpu_custom_call.1} parent=11 // pred_check
          %p194 = pneg %p81
        $region14: #{tpu_custom_call.1} parent=11 // pred_check_branch
          %196 = sbr.rel (%p194) target = $region16
        $region15: #{tpu_custom_call.1} parent=11 // pred_region
          _
        $region16: #{tpu_custom_call.1} parent=11 // pred_fallthru
          _
        // Predicated region
        $region17: #{tpu_custom_call.1} parent=11 // pred_check
          %p197 = pneg %p130
        $region18: #{tpu_custom_call.1} parent=11 // pred_check_branch
          %199 = sbr.rel (%p197) target = $region20
        $region19: #{tpu_custom_call.1} parent=11 // pred_region
          %s201 = ssub.s32 256, 256
          %202 = vsyncadd [#allocation6], %s201
          %s203 = sshll.u32 [#allocation7], 4
          %s204 = int_to_ptr.vmem [resolvable:$true] %s203
          %209 = dma.hbm_to_vmem [thread:$0]  %s3, 256, %s204, [#allocation6], 64, 64, 4
        $region20: #{tpu_custom_call.1} parent=11 // pred_fallthru
          _
        // Predicated region
        $region21: #{tpu_custom_call.1} parent=11 // pred_check
          %p210 = pneg %p151
        $region22: #{tpu_custom_call.1} parent=11 // pred_check_branch
          %212 = sbr.rel (%p210) target = $region24
        $region23: #{tpu_custom_call.1} parent=11 // pred_region
          _
        $region24: #{tpu_custom_call.1} parent=11 // pred_fallthru
          _
      $region12: #{tpu_custom_call.1} parent=5 // pred_fallthru
        _
      %p213 = scmp.lt.s32.totalorder %s20, 2
      // Predicated region
      $region25: #{tpu_custom_call.1} parent=5 // pred_check
        %p214 = pneg %p213
      $region26: #{tpu_custom_call.1} parent=5 // pred_check_branch
        %216 = sbr.rel (%p214) target = $region28
      $region27: #{tpu_custom_call.1} parent=5 // pred_region
        // Predicated region
        $region29: #{tpu_custom_call.1} parent=27 // pred_check
          %p217 = pneg %p54
        $region30: #{tpu_custom_call.1} parent=27 // pred_check_branch
          %219 = sbr.rel (%p217) target = $region32
        $region31: #{tpu_custom_call.1} parent=27 // pred_region
          %s220 = sand.u32 %s44, 1
          %s221 = scalar_lea.sflag [#allocation3], %s220
          %s222 = sand.u32 %s44, 1
          %s223 = smul.addr %s222, 6
          %s224 = scalar_lea.vmem [#allocation2], %s223
          %s226 = ssub.s32 96, 96
          %227 = vsyncadd %s221, %s226
          %s228 = smul.addr %s28, 3
          %s229 = smul.addr %s27, 3
          %s230 = sadd.s32 %s228, %s229
          %s231 = smul.addr %s230, 32
          %s232 = scalar_lea.hbm %s0, %s231
          %s234 = sshll.u32 %s224, 4
          %s235 = int_to_ptr.vmem [resolvable:$true] %s234
          %237 = dma.hbm_to_vmem [thread:$0]  %s232, 96, %s235, %s221
        $region32: #{tpu_custom_call.1} parent=27 // pred_fallthru
          _
        // Predicated region
        $region33: #{tpu_custom_call.1} parent=27 // pred_check
          %p238 = pneg %p103
        $region34: #{tpu_custom_call.1} parent=27 // pred_check_branch
          %240 = sbr.rel (%p238) target = $region36
        $region35: #{tpu_custom_call.1} parent=27 // pred_region
          %s241 = sand.u32 %s20, 1
          %s242 = scalar_lea.sflag [#allocation6], %s241
          %s243 = sand.u32 %s93, 1
          %s244 = smul.addr %s243, 32
          %s245 = scalar_lea.vmem [#allocation5], %s244
          %s246 = smul.u32 2, %s28
          %s248 = ssub.s32 512, 512
          %249 = vsyncadd %s242, %s248
          %s250 = smul.addr %s27, 8
          %s251 = sadd.s32 %s246, %s250
          %s252 = smul.addr %s251, 64
          %s253 = scalar_lea.hbm %s2, %s252
          %s254 = sshll.u32 %s245, 4
          %s255 = int_to_ptr.vmem [resolvable:$true] %s254
          %260 = dma.hbm_to_vmem [thread:$0]  %s253, 512, %s255, %s242, 128, 128, 8
        $region36: #{tpu_custom_call.1} parent=27 // pred_fallthru
          _
      $region28: #{tpu_custom_call.1} parent=5 // pred_fallthru
        _
      %p261 = scmp.le.s32.totalorder 1, %s20
      %p262 = scmp.lt.s32.totalorder %s20, 3
      %p263 = pnand %p261, %p262
      %p264 = pneg %p263
      // Predicated region
      $region37: #{tpu_custom_call.1} parent=5 // pred_check
        _
      $region38: #{tpu_custom_call.1} parent=5 // pred_check_branch
        %266 = sbr.rel (%p263) target = $region40
      $region39: #{tpu_custom_call.1} parent=5 // pred_region
        %s267 = ssub.s32 %s20, 1
        %s268 = sand.u32 %s47, 1
        %s269 = scalar_lea.sflag [#allocation3], %s268
        %s270 = sand.u32 %s47, 1
        %s271 = smul.addr %s270, 6
        %s272 = scalar_lea.vmem [#allocation2], %s271
        // Predicated region
        $region41: #{tpu_custom_call.1} parent=39 // pred_check
          %p273 = pneg %p60
        $region42: #{tpu_custom_call.1} parent=39 // pred_check_branch
          %275 = sbr.rel (%p273) target = $region44
        $region43: #{tpu_custom_call.1} parent=39 // pred_region
          %276 = dma.done %s269, 96
        $region44: #{tpu_custom_call.1} parent=39 // pred_fallthru
          _
        %s277 = sand.u32 %s25, 1
        %s278 = scalar_lea.sflag [#allocation6], %s277
        %s279 = sand.u32 %s96, 1
        %s280 = smul.addr %s279, 32
        %s281 = scalar_lea.vmem [#allocation5], %s280
        // Predicated region
        $region45: #{tpu_custom_call.1} parent=39 // pred_check
          %p282 = pneg %p109
        $region46: #{tpu_custom_call.1} parent=39 // pred_check_branch
          %284 = sbr.rel (%p282) target = $region48
        $region47: #{tpu_custom_call.1} parent=39 // pred_region
          %285 = dma.done %s278, 512
        $region48: #{tpu_custom_call.1} parent=39 // pred_fallthru
          _
        // Predicated region
        $region49: #{tpu_custom_call.1} parent=39 // pred_check
          %p286 = pneg %p130
        $region50: #{tpu_custom_call.1} parent=39 // pred_check_branch
          %288 = sbr.rel (%p286) target = $region52
        $region51: #{tpu_custom_call.1} parent=39 // pred_region
          %289 = dma.done [#allocation6], 256
        $region52: #{tpu_custom_call.1} parent=39 // pred_fallthru
          _
        %s290 = sand.u32 %s47, 1
        %s291 = scalar_lea.sflag [#allocation3], %s290
        %s292 = sand.u32 %s47, 1
        %s293 = smul.addr %s292, 6
        %s294 = scalar_lea.vmem [#allocation2], %s293
        %p295 = pneg %p60
        %p296 = pneg %p57
        %p297 = pneg %p81
        %p298 = pneg %p78
        %s299 = sand.u32 %s25, 1
        %s300 = scalar_lea.sflag [#allocation6], %s299
        %s301 = sand.u32 %s96, 1
        %s302 = smul.addr %s301, 32
        %s303 = scalar_lea.vmem [#allocation5], %s302
        %p304 = pneg %p109
        %p305 = pneg %p106
        %p306 = pneg %p130
        %p307 = pneg %p127
        %p308 = pneg %p151
        %p309 = pneg %p148
        %p310 = pneg %p179
        %p311 = pneg %p176
        %s312 = sand.u32 %s166, 1
        %s313 = scalar_lea.sflag [#allocation4], %s312
        %s314 = sand.u32 %s166, 1
        %s315 = smul.addr %s314, 32
        %s316 = scalar_lea.vmem [#allocation8], %s315
        %s317 = smul.u32 2, %s30
        %s318 = smul.u32 2, %s30
        %v320 = vld [vmem:[%s272] sm:$0x3f]
        %v321 = vunpack.c.l.bf16 %v320
        %v322 = vunpack.c.h.bf16 %v320
        %s323 = smul.u32 %s30, 256
        %v324 = vlaneseq
        %v325 = vand.u32 %v324, 127
        %v326 = vadd.s32 %v325, 128
        %v327 = vstv %s323
        %v328 = vadd.s32 %v327, %v325
        %v329 = vadd.s32 %v327, %v326
        %vm330 = vcmp.lt.s32.totalorder %v328, 0
        %v331 = vsub.s32 0, %v328
        %v332 = vsel %vm330, %v331, %v328
        %v333 = vshrl.u32 %v332, 4
        %v334 = vand.u32 %v332, 15
        %v335 = vsub.s32 0, %v334
        %v336 = vsel %vm330, %v335, %v334
        %vm337 = vcmp.lt.s32.totalorder %v329, 0
        %v338 = vsub.s32 0, %v329
        %v339 = vsel %vm337, %v338, %v329
        %v340 = vshrl.u32 %v339, 4
        %v341 = vand.u32 %v339, 15
        %v342 = vsub.s32 0, %v341
        %v343 = vsel %vm337, %v342, %v341
        %vm344 = vcmp.ne.s32.totalorder %v336, 0
        %vm345 = vcmp.ne.s32.totalorder %v343, 0
        %vm346 = vcmp.lt.s32.totalorder %v336, 0
        %vm347 = vcmp.lt.s32.totalorder %v343, 0
        %vm348 = vmand %vm346, %vm344
        %vm349 = vmand %vm347, %vm345
        %v350 = vadd.s32 %v336, 16
        %v351 = vadd.s32 %v343, 16
        %v352 = vsel %vm348, %v350, %v336
        %v353 = vsel %vm349, %v351, %v343
        %vm354 = vcmp.ne.s32.totalorder %v352, 0
        %vm355 = vcmp.ne.s32.totalorder %v353, 0
        %vm356 = vcmp.ne.s32.totalorder %v352, 15
        %vm357 = vcmp.ne.s32.totalorder %v353, 15
        %v358 = vsel %vm354, 1, 0
        %v359 = vsel %vm355, 1, 0
        %vm360 = vcmp.eq.s32.totalorder %v358, 1
        %vm361 = vcmp.eq.s32.totalorder %v359, 1
        %v363 = vcombine.high %v321, %v321
        %v365 = vsel %vm360, %v321, 0.0
        %v366 = vsel %vm361, %v363, 0.0
        %v367 = vsel %vm356, 1, 0
        %v368 = vsel %vm357, 1, 0
        %vm369 = vcmp.eq.s32.totalorder %v367, 1
        %vm370 = vcmp.eq.s32.totalorder %v368, 1
        %372 = vrot.lane.b32.xlu0 %v321, 126
        %v373 = vpop.permute.xlu0 %372
        %374 = vrot.lane.b32.xlu0 %v363, 126
        %v375 = vpop.permute.xlu0 %374
        %376 = vrot.lane.b32.xlu0 %v322, 126
        %v377 = vpop.permute.xlu0 %376
        %vm378 = vcmask 1031168
        %v379 = vsel %vm378, %v373, %v375
        %v380 = vsel %vm378, %v375, %v377
        %v383 = vsel %vm369, %v379, 0.0
        %v384 = vsel %vm370, %v380, 0.0
        %385 = vrot.lane.b32.xlu0 %v321, 112
        %v386 = vpop.permute.xlu0 %385
        %387 = vrot.lane.b32.xlu0 %v363, 112
        %v388 = vpop.permute.xlu0 %387
        %389 = vrot.lane.b32.xlu0 %v322, 112
        %v390 = vpop.permute.xlu0 %389
        %vm391 = vcmask 916480
        %v392 = vsel %vm391, %v386, %v388
        %v393 = vsel %vm391, %v388, %v390
        %v396 = vsel %vm360, %v392, 0.0
        %v397 = vsel %vm361, %v393, 0.0
        %398 = vrot.lane.b32.xlu0 %v321, 110
        %v399 = vpop.permute.xlu0 %398
        %400 = vrot.lane.b32.xlu0 %v363, 110
        %v401 = vpop.permute.xlu0 %400
        %402 = vrot.lane.b32.xlu0 %v322, 110
        %v403 = vpop.permute.xlu0 %402
        %vm404 = vcmask 900096
        %v405 = vsel %vm404, %v399, %v401
        %v406 = vsel %vm404, %v401, %v403
        %v409 = vsel %vm369, %v405, 0.0
        %v410 = vsel %vm370, %v406, 0.0
        %411 = vrot.lane.b32.xlu0 %v321, 96
        %v412 = vpop.permute.xlu0 %411
        %413 = vrot.lane.b32.xlu0 %v363, 96
        %v414 = vpop.permute.xlu0 %413
        %415 = vrot.lane.b32.xlu0 %v322, 96
        %v416 = vpop.permute.xlu0 %415
        %vm417 = vcmask 785408
        %v418 = vsel %vm417, %v412, %v414
        %v419 = vsel %vm417, %v414, %v416
        %v422 = vsel %vm360, %v418, 0.0
        %v423 = vsel %vm361, %v419, 0.0
        %424 = vrot.lane.b32.xlu0 %v321, 94
        %v425 = vpop.permute.xlu0 %424
        %426 = vrot.lane.b32.xlu0 %v363, 94
        %v427 = vpop.permute.xlu0 %426
        %428 = vrot.lane.b32.xlu0 %v322, 94
        %v429 = vpop.permute.xlu0 %428
        %vm430 = vcmask 769024
        %v431 = vsel %vm430, %v425, %v427
        %v432 = vsel %vm430, %v427, %v429
        %v435 = vsel %vm369, %v431, 0.0
        %v436 = vsel %vm370, %v432, 0.0
        %v437 = vcombine.low %v321, %v321
        %v438 = vcombine.low %v322, %v322
        %439 = vrot.lane.b32.xlu0 %v437, 127
        %v440 = vpop.permute.xlu0 %439
        %441 = vrot.lane.b32.xlu0 %v321, 127
        %v442 = vpop.permute.xlu0 %441
        %443 = vrot.lane.b32.xlu0 %v438, 127
        %v444 = vpop.permute.xlu0 %443
        %vm445 = vcmask 1039360
        %v446 = vsel %vm445, %v440, %v442
        %v447 = vsel %vm445, %v442, %v444
        %v452 = vrot.slane %v396, 4
        %v453 = vrot.slane %v397, 4
        %456 = vrot.lane.b32.xlu0 %v321, 111
        %v457 = vpop.permute.xlu0 %456
        %458 = vrot.lane.b32.xlu0 %v363, 111
        %v459 = vpop.permute.xlu0 %458
        %460 = vrot.lane.b32.xlu0 %v322, 111
        %v461 = vpop.permute.xlu0 %460
        %vm462 = vcmask 908288
        %v463 = vsel %vm462, %v457, %v459
        %v464 = vsel %vm462, %v459, %v461
        %v469 = vrot.slane %v409, 4
        %v470 = vrot.slane %v410, 4
        %473 = vrot.lane.b32.xlu0 %v437, 95
        %v474 = vpop.permute.xlu0 %473
        %475 = vrot.lane.b32.xlu0 %v321, 95
        %v476 = vpop.permute.xlu0 %475
        %477 = vrot.lane.b32.xlu0 %v438, 95
        %v478 = vpop.permute.xlu0 %477
        %vm479 = vcmask 777216
        %v480 = vsel %vm479, %v474, %v476
        %v481 = vsel %vm479, %v476, %v478
        %vm484 = vcmask 1043456
        %v485 = vsel %vm484, %v365, %v446
        %v486 = vsel %vm484, %v366, %v447
        %v487 = vsel %vm484, %v383, %v452
        %v488 = vsel %vm484, %v384, %v453
        %v489 = vsel %vm484, %v463, %v469
        %v490 = vsel %vm484, %v464, %v470
        %v491 = vsel %vm484, %v422, %v480
        %v492 = vsel %vm484, %v423, %v481
        %v493 = vld [vmem:[%s1] sm:$0xff]
        %v494 = vld [vmem:[%s1 + $0x8] sm:$0xff]
        %v495 = vld [vmem:[%s1 + $0x10] sm:$0xff]
        %v496 = vld [vmem:[%s1 + $0x18] sm:$0xff]
        %v497 = vld [vmem:[%s4] sm:$0xff]
        %v498 = vld [vmem:[%s4 + $0x8] sm:$0xff]
        %v499 = vld [vmem:[%s4 + $0x10] sm:$0xff]
        %v500 = vld [vmem:[%s4 + $0x18] sm:$0xff]
        %502 = vset.pattern.permute.xlu0 0
        %503 = vperm.xlu0 %502, %v497
        %v504 = vpop.permute.xlu0 %503
        %507 = vset.pattern.permute.xlu0 0
        %508 = vperm.xlu0 %507, %v498
        %v509 = vpop.permute.xlu0 %508
        %512 = vset.pattern.permute.xlu0 0
        %513 = vperm.xlu0 %512, %v499
        %v514 = vpop.permute.xlu0 %513
        %517 = vset.pattern.permute.xlu0 0
        %518 = vperm.xlu0 %517, %v500
        %v519 = vpop.permute.xlu0 %518
        %vm521 = vcmask 293888
        %v523 = vsel %vm521, %v493, 0
        %v526 = vsel %vm521, %v494, 0
        %v529 = vsel %vm521, %v495, 0
        %v532 = vsel %vm521, %v496, 0
        %v535 = vsel %vm484, %v435, 0
        %v538 = vsel %vm484, %v436, 0
        %540 = vmatprep.subr.mxu0 %v486
        %541 = vmatpush1.msra.mxu0 %v485
        %542 = vmatprep.subr.mxu0 %v488
        %543 = vmatpush1.msra.mxu0 %v487
        %544 = vmatprep.subr.mxu0 %v490
        %545 = vmatpush1.msra.mxu0 %v489
        %546 = vmatprep.subr.mxu0 %v492
        %547 = vmatpush1.msra.mxu0 %v491
        %548 = vmatprep.subr.mxu0 %v538
        %549 = vmatpush1.msra.mxu0 %v535
        %550 = vmatprep.subr.mxu0 0.0
        %551 = vmatpush1.msra.mxu0 0.0
        %552 = vmatprep.subr.mxu0 0.0
        %553 = vmatpush1.msra.mxu0 0.0
        %554 = vmatprep.subr.mxu0 0.0
        %555 = vmatpush1.msra.mxu0 0.0
        %556 = vmatprep.subr.mxu0 0.0
        %557 = vmatpush1.msra.mxu0 0.0
        %558 = vmatprep.subr.mxu0 0.0
        %559 = vmatpush1.msra.mxu0 0.0
        %560 = vmatprep.subr.mxu0 0.0
        %561 = vmatpush1.msra.mxu0 0.0
        %562 = vmatprep.subr.mxu0 0.0
        %563 = vmatpush1.msra.mxu0 0.0
        %564 = vmatprep.subr.mxu0 0.0
        %565 = vmatpush1.msra.mxu0 0.0
        %566 = vmatprep.subr.mxu0 0.0
        %567 = vmatpush1.msra.mxu0 0.0
        %568 = vmatprep.subr.mxu0 0.0
        %569 = vmatpush1.msra.mxu0 0.0
        %570 = vmatprep.subr.mxu0 0.0
        %571 = vmatpush1.msra.mxu0 0.0
        %572 = vmatprep.subr.mxu0 0.0
        %573 = vmatpush1.msra.mxu0 0.0
        %574 = vmatprep.subr.mxu0 0.0
        %575 = vmatpush1.msra.mxu0 0.0
        %576 = vmatprep.subr.mxu0 0.0
        %577 = vmatpush1.msra.mxu0 0.0
        %578 = vmatprep.subr.mxu0 0.0
        %579 = vmatpush1.msra.mxu0 0.0
        %580 = vmatprep.subr.mxu0 0.0
        %581 = vmatpush1.msra.mxu0 0.0
        %582 = vmatprep.subr.mxu0 0.0
        %583 = vmatpush1.msra.mxu0 0.0
        %584 = vmatprep.subr.mxu0 0.0
        %585 = vmatpush1.msra.mxu0 0.0
        %586 = vmatprep.subr.mxu0 0.0
        %587 = vmatpush1.msra.mxu0 0.0
        %588 = vmatprep.subr.mxu0 0.0
        %589 = vmatpush1.msra.mxu0 0.0
        %590 = vmatprep.subr.mxu0 0.0
        %591 = vmatpush1.msra.mxu0 0.0
        %592 = vmatprep.subr.mxu0 0.0
        %593 = vmatpush1.msra.mxu0 0.0
        %594 = vmatprep.subr.mxu0 0.0
        %595 = vmatpush1.msra.mxu0 0.0
        %596 = vmatprep.subr.mxu0 0.0
        %597 = vmatpush1.msra.mxu0 0.0
        %598 = vmatprep.subr.mxu0 0.0
        %599 = vmatpush1.msra.mxu0 0.0
        %600 = vmatprep.subr.mxu0 0.0
        %601 = vmatpush1.msra.mxu0 0.0
        %602 = vmatprep.subr.mxu0 0.0
        %603 = vmatpush1.msra.mxu0 0.0
        %604 = vmatprep.mubr.f32.mxu0 0.0
        %605 = vmatmul.mubr.f32.gmra.mrb[0].mxu0 %v523
        %v606 = vpop.f32.mrb[0].mxu0
        %v607 = vadd.f32 %v504, %v606
        %v608 = vpop.f32.mrb[0].mxu0
        %v609 = vadd.f32 %v504, %v608
        %610 = vmatprep.mubr.f32.mxu0 0.0
        %611 = vmatmul.mubr.f32.gmra.mrb[0].mxu0 %v526
        %v612 = vpop.f32.mrb[0].mxu0
        %v613 = vadd.f32 %v509, %v612
        %v614 = vpop.f32.mrb[0].mxu0
        %v615 = vadd.f32 %v509, %v614
        %616 = vmatprep.mubr.f32.mxu0 0.0
        %617 = vmatmul.mubr.f32.gmra.mrb[0].mxu0 %v529
        %v618 = vpop.f32.mrb[0].mxu0
        %v619 = vadd.f32 %v514, %v618
        %v620 = vpop.f32.mrb[0].mxu0
        %v621 = vadd.f32 %v514, %v620
        %622 = vmatprep.mubr.f32.mxu0 0.0
        %623 = vmatmul.mubr.f32.gmra.mrb[0].mxu0 %v532
        %v624 = vpop.f32.mrb[0].mxu0
        %v625 = vadd.f32 %v519, %v624
        %v626 = vpop.f32.mrb[0].mxu0
        %v627 = vadd.f32 %v519, %v626
        %628 = vdwg.mxu0
        %v629 = vmax.f32 %v607, 0.0
        %v630 = vmax.f32 %v609, 0.0
        %v631 = vmax.f32 %v613, 0.0
        %v632 = vmax.f32 %v615, 0.0
        %v633 = vmax.f32 %v619, 0.0
        %v634 = vmax.f32 %v621, 0.0
        %v635 = vmax.f32 %v625, 0.0
        %v636 = vmax.f32 %v627, 0.0
        %v637 = vld [vmem:[#allocation7] sm:$0xf]
        %v638 = vld [vmem:[#allocation7 + $0x4] sm:$0xf]
        %v639 = vld [vmem:[#allocation7 + $0x8] sm:$0xf]
        %v640 = vld [vmem:[#allocation7 + $0xc] sm:$0xf]
        %v641 = vld [vmem:[%s281] sm:$0xff]
        %v642 = vld [vmem:[%s281 + $0x8] sm:$0xff]
        %v643 = vld [vmem:[%s281 + $0x10] sm:$0xff]
        %v644 = vld [vmem:[%s281 + $0x18] sm:$0xff]
        %645 = vset.pattern.permute.xlu0 1
        %646 = vperm.xlu0 %645, %v497
        %v647 = vpop.permute.xlu0 %646
        %649 = vset.pattern.permute.xlu0 1
        %650 = vperm.xlu0 %649, %v498
        %v651 = vpop.permute.xlu0 %650
        %653 = vset.pattern.permute.xlu0 1
        %654 = vperm.xlu0 %653, %v499
        %v655 = vpop.permute.xlu0 %654
        %657 = vset.pattern.permute.xlu0 1
        %658 = vperm.xlu0 %657, %v500
        %v659 = vpop.permute.xlu0 %658
        %v665 = vunpack.c.l.b16 %v637
        %v666 = vunpack.c.l.b16 %v638
        %v667 = vunpack.c.l.b16 %v639
        %v668 = vunpack.c.l.b16 %v640
        %v669 = vpack.c.b16 %v666, %v665
        %v670 = vpack.c.b16 %v668, %v667
        %v675 = vunpack.c.l.b16 %v641
        %v676 = vunpack.c.h.b16 %v641
        %v677 = vunpack.c.l.b16 %v642
        %v678 = vunpack.c.h.b16 %v642
        %v679 = vunpack.c.l.b16 %v643
        %v680 = vunpack.c.h.b16 %v643
        %v681 = vunpack.c.l.b16 %v644
        %v682 = vunpack.c.h.b16 %v644
        %v683 = vpack.c.b16 %v677, %v675
        %v684 = vpack.c.b16 %v678, %v676
        %v685 = vpack.c.b16 %v681, %v679
        %v686 = vpack.c.b16 %v682, %v680
        %vm691 = vcmask 261120
        %v693 = vsel %vm691, %v669, 0
        %v696 = vsel %vm691, %v670, 0
        %698 = vmatprep.subr.bf16.mxu0 %v684
        %699 = vmatpush1.bf16.msra.mxu0 %v683
        %700 = vmatprep.subr.bf16.mxu0 %v686
        %701 = vmatpush1.bf16.msra.mxu0 %v685
        %702 = vmatprep.subr.bf16.mxu0 0
        %703 = vmatpush1.bf16.msra.mxu0 0
        %704 = vmatprep.subr.bf16.mxu0 0
        %705 = vmatpush1.bf16.msra.mxu0 0
        %706 = vmatprep.subr.bf16.mxu0 0
        %707 = vmatpush1.bf16.msra.mxu0 0
        %708 = vmatprep.subr.bf16.mxu0 0
        %709 = vmatpush1.bf16.msra.mxu0 0
        %710 = vmatprep.subr.bf16.mxu0 0
        %711 = vmatpush1.bf16.msra.mxu0 0
        %712 = vmatprep.subr.bf16.mxu0 0
        %713 = vmatpush1.bf16.msra.mxu0 0
        %714 = vmatprep.subr.bf16.mxu0 0
        %715 = vmatpush1.bf16.msra.mxu0 0
        %716 = vmatprep.subr.bf16.mxu0 0
        %717 = vmatpush1.bf16.msra.mxu0 0
        %718 = vmatprep.subr.bf16.mxu0 0
        %719 = vmatpush1.bf16.msra.mxu0 0
        %720 = vmatprep.subr.bf16.mxu0 0
        %721 = vmatpush1.bf16.msra.mxu0 0
        %722 = vmatprep.subr.bf16.mxu0 0
        %723 = vmatpush1.bf16.msra.mxu0 0
        %724 = vmatprep.subr.bf16.mxu0 0
        %725 = vmatpush1.bf16.msra.mxu0 0
        %726 = vmatprep.subr.bf16.mxu0 0
        %727 = vmatpush1.bf16.msra.mxu0 0
        %728 = vmatprep.subr.bf16.mxu0 0
        %729 = vmatpush1.bf16.msra.mxu0 0
        %730 = vmatprep.mubr.bf16.mxu0 0
        %731 = vmatmul.mubr.bf16.gmra.mrb[0].mxu0 %v693
        %v732 = vpop.f32.mrb[0].mxu0
        %v733 = vadd.f32 %v647, %v732
        %v734 = vpop.f32.mrb[0].mxu0
        %v735 = vadd.f32 %v647, %v734
        %v736 = vpop.f32.mrb[0].mxu0
        %v737 = vadd.f32 %v651, %v736
        %v738 = vpop.f32.mrb[0].mxu0
        %v739 = vadd.f32 %v651, %v738
        %740 = vmatprep.mubr.bf16.mxu0 0
        %741 = vmatmul.mubr.bf16.gmra.mrb[0].mxu0 %v696
        %v742 = vpop.f32.mrb[0].mxu0
        %v743 = vadd.f32 %v655, %v742
        %v744 = vpop.f32.mrb[0].mxu0
        %v745 = vadd.f32 %v655, %v744
        %v746 = vpop.f32.mrb[0].mxu0
        %v747 = vadd.f32 %v659, %v746
        %v748 = vpop.f32.mrb[0].mxu0
        %v749 = vadd.f32 %v659, %v748
        %750 = vdwg.mxu0
        %v751 = vmax.f32 %v733, 0.0
        %v752 = vmax.f32 %v735, 0.0
        %v753 = vmax.f32 %v737, 0.0
        %v754 = vmax.f32 %v739, 0.0
        %v755 = vmax.f32 %v743, 0.0
        %v756 = vmax.f32 %v745, 0.0
        %v757 = vmax.f32 %v747, 0.0
        %v758 = vmax.f32 %v749, 0.0
        %v759 = vadd.f32 %v629, %v751
        %v760 = vadd.f32 %v630, %v752
        %v761 = vadd.f32 %v631, %v753
        %v762 = vadd.f32 %v632, %v754
        %v763 = vadd.f32 %v633, %v755
        %v764 = vadd.f32 %v634, %v756
        %v765 = vadd.f32 %v635, %v757
        %v766 = vadd.f32 %v636, %v758
        %v767 = vpack.c.bf16 %v761, %v759
        %v768 = vpack.c.bf16 %v762, %v760
        %v769 = vpack.c.bf16 %v765, %v763
        %v770 = vpack.c.bf16 %v766, %v764
        %v775 = vunpack.c.l.b16 %v767
        %v776 = vunpack.c.l.b16 %v768
        %v777 = vunpack.c.h.b16 %v767
        %v778 = vunpack.c.h.b16 %v768
        %v779 = vunpack.c.l.b16 %v769
        %v780 = vunpack.c.l.b16 %v770
        %v781 = vunpack.c.h.b16 %v769
        %v782 = vunpack.c.h.b16 %v770
        %v783 = vpack.c.b16 %v776, %v775
        %v784 = vpack.c.b16 %v778, %v777
        %v785 = vpack.c.b16 %v780, %v779
        %v786 = vpack.c.b16 %v782, %v781
        %791 = vst [vmem:[%s316] sm:$0xff] %v783
        %792 = vst [vmem:[%s316 + $0x8] sm:$0xff] %v784
        %793 = vst [vmem:[%s316 + $0x10] sm:$0xff] %v785
        %794 = vst [vmem:[%s316 + $0x18] sm:$0xff] %v786
        %s795 = sand.u32 %s166, 1
        %s796 = scalar_lea.sflag [#allocation4], %s795
        %s797 = sand.u32 %s166, 1
        %s798 = smul.addr %s797, 32
        %s799 = scalar_lea.vmem [#allocation8], %s798
        // Predicated region
        $region53: #{tpu_custom_call.1} parent=39 // pred_check
          %p800 = pneg %p176
        $region54: #{tpu_custom_call.1} parent=39 // pred_check_branch
          %802 = sbr.rel (%p800) target = $region56
        $region55: #{tpu_custom_call.1} parent=39 // pred_region
          %s803 = smul.u32 2, %s30
          %s805 = ssub.s32 512, 512
          %806 = vsyncadd %s796, %s805
          %s807 = smul.addr %s29, 8
          %s808 = sadd.s32 %s803, %s807
          %s809 = smul.addr %s808, 64
          %s810 = scalar_lea.hbm %s5, %s809
          %s811 = sshll.u32 %s799, 4
          %s812 = int_to_ptr.vmem [resolvable:$true] %s811
          %817 = dma.vmem_to_hbm [thread:$0]  %s812, 512, %s810, %s796, 128, 128, 8
        $region56: #{tpu_custom_call.1} parent=39 // pred_fallthru
          _
      $region40: #{tpu_custom_call.1} parent=5 // pred_fallthru
        _
      %p818 = scmp.le.s32.totalorder 2, %s20
      // Predicated region
      $region57: #{tpu_custom_call.1} parent=5 // pred_check
        %p819 = pneg %p818
      $region58: #{tpu_custom_call.1} parent=5 // pred_check_branch
        %821 = sbr.rel (%p819) target = $region60
      $region59: #{tpu_custom_call.1} parent=5 // pred_region
        %s822 = ssub.s32 %s20, 2
        // Predicated region
        $region61: #{tpu_custom_call.1} parent=59 // pred_check
          %p823 = pneg %p182
        $region62: #{tpu_custom_call.1} parent=59 // pred_check_branch
          %825 = sbr.rel (%p823) target = $region64
        $region63: #{tpu_custom_call.1} parent=59 // pred_region
          %s826 = sand.u32 %s167, 1
          %s827 = scalar_lea.sflag [#allocation4], %s826
          %s828 = sand.u32 %s167, 1
          %s829 = smul.addr %s828, 32
          %s830 = scalar_lea.vmem [#allocation8], %s829
          %831 = dma.done %s827, 512
        $region64: #{tpu_custom_call.1} parent=59 // pred_fallthru
          _
      $region60: #{tpu_custom_call.1} parent=5 // pred_fallthru
        _
    $region6: #{tpu_custom_call.1} parent=1 // loop_footer
      %s24 = sadd.s32 1, %s20
    $region7: #{tpu_custom_call.1} parent=1 // loop_footer_branch
      %19 = sbr.rel target = $region3
    $region8: #{tpu_custom_call.1} parent=1 // loop_exit
      _
    %832 = vsyncpa [#allocation3], 1
    %s833 = scalar_lea.sflag [#allocation3], 1
    %834 = vsyncpa %s833, 1
    %835 = vsyncpa [#allocation6], 1
    %s836 = scalar_lea.sflag [#allocation6], 1
    %837 = vsyncpa %s836, 1
    %838 = vsyncpa [#allocation4], 1
    %s839 = scalar_lea.sflag [#allocation4], 1
    %840 = vsyncpa %s839, 1

</llo_original>
